<compile_context>
chip_gen: v6e
topology: v6e:2x2x1
jax: 0.10.0
libtpu: 0.0.40
codegen_flags: <defaults>
</compile_context>

<pallas_src>
import jax
import jax.numpy as jnp
from jax.experimental import pallas as pl
from jax.experimental.pallas import tpu as pltpu

W3_PAD = 8          # layer-3 output columns after zero-padding (q1=col 0, q2=col 1)
MAX_TILE_B = 2048   # per-step batch tile; working set ~few MiB even at this size


def _mish(x):
    # softplus via logaddexp (numerically stable, matches torch); exp/tanh on EUP.
    return x * jnp.tanh(jnp.logaddexp(x, 0.0))


def critic_kernel(x_ref, w1_ref, b1_ref, w2_ref, b2_ref, w3_ref, b3_ref, out_ref):
    # Layer 1: single wide dot over the full contraction dim (state||action).
    h = _mish(jnp.dot(x_ref[...], w1_ref[...], preferred_element_type=jnp.float32)
              + b1_ref[...])
    # Layer 2: block-diagonal fused weights keep the two heads independent.
    h = _mish(jnp.dot(h, w2_ref[...], preferred_element_type=jnp.float32)
              + b2_ref[...])
    # Layer 3: (2*H2, 8) padded weights -> (tile_b, 8); transpose on the XLU so the
    # HBM store is a lane-dense (2, tile_b) block (row 0 = q1, row 1 = q2).
    y = (jnp.dot(h, w3_ref[...], preferred_element_type=jnp.float32) + b3_ref[...])
    out_ref[...] = jnp.transpose(y)[:2, :]


def init_params(key, d_in, mlp_dims):
    """Deterministic synthetic params; shapes follow [d_in] + mlp_dims + [1]."""
    dims = [d_in] + list(mlp_dims) + [1]
    params = {}
    for q in ("q1", "q2"):
        for i in range(len(dims) - 1):
            key, kw, kb = jax.random.split(key, 3)
            bound = 1.0 / float(dims[i]) ** 0.5
            params[f"{q}_w{i + 1}"] = jax.random.uniform(
                kw, (dims[i], dims[i + 1]), jnp.float32, -bound, bound)
            params[f"{q}_b{i + 1}"] = jax.random.uniform(
                kb, (1, dims[i + 1]), jnp.float32, -bound, bound)
    return params


def _block_diag(a, b):
    top = jnp.concatenate([a, jnp.zeros((a.shape[0], b.shape[1]), a.dtype)], axis=1)
    bot = jnp.concatenate([jnp.zeros((b.shape[0], a.shape[1]), b.dtype), b], axis=1)
    return jnp.concatenate([top, bot], axis=0)


def pack_params(params):
    """Fuse the two Q heads into wide / block-diagonal matrices. Call ONCE."""
    # Layer 1: concat heads along output dim (full D_in contraction, no split).
    w1 = jnp.concatenate([params["q1_w1"], params["q2_w1"]], axis=1)  # (D_in, 2H1)
    b1 = jnp.concatenate([params["q1_b1"], params["q2_b1"]], axis=1)  # (1, 2H1)
    # Layer 2: block-diagonal so the heads stay independent.
    w2 = _block_diag(params["q1_w2"], params["q2_w2"])                # (2H1, 2H2)
    b2 = jnp.concatenate([params["q1_b2"], params["q2_b2"]], axis=1)  # (1, 2H2)
    # Layer 3: block-diagonal (2H2, 2), zero-padded to W3_PAD cols.
    w3_small = _block_diag(params["q1_w3"], params["q2_w3"])          # (2H2, 2)
    b3_small = jnp.concatenate([params["q1_b3"], params["q2_b3"]], axis=1)  # (1, 2)
    w3 = jnp.zeros((w3_small.shape[0], W3_PAD), jnp.float32).at[:, :2].set(w3_small)
    b3 = jnp.zeros((1, W3_PAD), jnp.float32).at[:, :2].set(b3_small)
    return {"w1": w1, "b1": b1, "w2": w2, "b2": b2, "w3": w3, "b3": b3}


def _choose_tile_b(B):
    if B <= 256:
        return B  # one full-batch tile; block == full dim satisfies (8,128) rules
    # >= 4 grid steps (megacore sharding on v7x + DMA/compute overlap), tiles
    # rounded up to a multiple of 128 so (tile_b, *) / (*, tile_b) blocks stay
    # sublane/lane aligned; Pallas masks the ragged tail tile.
    t = pl.cdiv(B, 4)
    t = ((t + 127) // 128) * 128
    return min(t, MAX_TILE_B)


def critic_obs_act_forward(state, action, packed):
    """state: (B, To, Do), action: (B, Ta, Da) -> (q1, q2), each (B,)."""
    B = state.shape[0]
    s = state.reshape(B, -1).astype(jnp.float32)
    a = action.reshape(B, -1).astype(jnp.float32)
    x = jnp.concatenate([s, a], axis=-1)            # (B, D_in), cheap wrapper concat
    d_in = x.shape[1]

    tile_b = _choose_tile_b(B)
    grid = (pl.cdiv(B, tile_b),)

    d_h1 = packed["w1"].shape[1]
    d_h2 = packed["w2"].shape[1]
    cost = pl.CostEstimate(
        flops=2 * B * (d_in * d_h1 + d_h1 * d_h2 + d_h2 * W3_PAD),
        transcendentals=2 * B * (d_h1 + d_h2),
        bytes_accessed=4 * (B * d_in + 2 * B)
        + 4 * sum(int(v.size) for v in packed.values()),
    )

    def const_spec(w):
        return pl.BlockSpec(w.shape, lambda i: (0, 0))

    out = pl.pallas_call(
        critic_kernel,
        out_shape=jax.ShapeDtypeStruct((2, B), jnp.float32),
        grid=grid,
        in_specs=[
            pl.BlockSpec((tile_b, d_in), lambda i: (i, 0)),
            const_spec(packed["w1"]),
            const_spec(packed["b1"]),
            const_spec(packed["w2"]),
            const_spec(packed["b2"]),
            const_spec(packed["w3"]),
            const_spec(packed["b3"]),
        ],
        out_specs=pl.BlockSpec((2, tile_b), lambda i: (0, i)),
        compiler_params=pltpu.CompilerParams(
            dimension_semantics=("parallel",)),
        cost_estimate=cost,
    )(x,
      packed["w1"], packed["b1"],
      packed["w2"], packed["b2"],
      packed["w3"], packed["b3"])

    # Row 0 = q1, row 1 = q2 (matches torch's q.squeeze(1)); contiguous slices.
    return out[0], out[1]


def _reference(state, action, params):
    B = state.shape[0]
    x = jnp.concatenate([state.reshape(B, -1), action.reshape(B, -1)], axis=-1)
    outs = []
    for q in ("q1", "q2"):
        h = x
        h = _mish(h @ params[f"{q}_w1"] + params[f"{q}_b1"])
        h = _mish(h @ params[f"{q}_w2"] + params[f"{q}_b2"])
        h = h @ params[f"{q}_w3"] + params[f"{q}_b3"]
        outs.append(h[:, 0])
    return tuple(outs)


if __name__ == "__main__":
    # Small shapes implied by the forward: state (B, To, Do), action (B, Ta, Da)
    B, To, Do = 2, 4, 8          # cond_dim = To * Do = 32
    Ta, Da = 4, 8                # action_dim * action_steps = 32
    mlp_dims = [64, 64]          # hidden widths -> fused widths 128, 128
    d_in = To * Do + Ta * Da     # 64

    key = jax.random.PRNGKey(0)
    k_state, k_action, k_params = jax.random.split(key, 3)
    state = jax.random.normal(k_state, (B, To, Do), jnp.float32)
    action = jax.random.normal(k_action, (B, Ta, Da), jnp.float32)
    params = init_params(k_params, d_in, mlp_dims)
    packed = pack_params(params)   # one-time head fusion / packing

    q1, q2 = critic_obs_act_forward(state, action, packed)
    q1 = jax.block_until_ready(q1)
    q2 = jax.block_until_ready(q2)

    r1, r2 = _reference(state, action, params)
    assert q1.shape == (B,) and q2.shape == (B,)
    assert jnp.allclose(q1, r1, atol=1e-4, rtol=1e-4)
    assert jnp.allclose(q2, r2, atol=1e-4, rtol=1e-4)

    print("KERNEL_OK")
</pallas_src>

<mosaic_0001>
module attributes {stable_mosaic.version = 11 : i64} {
  func.func @critic_kernel(%arg0: i32, %arg1: memref<2x64xf32, #tpu.memory_space<vmem>>, %arg2: memref<64x128xf32, #tpu.memory_space<vmem>>, %arg3: memref<1x128xf32, #tpu.memory_space<vmem>>, %arg4: memref<128x128xf32, #tpu.memory_space<vmem>>, %arg5: memref<1x128xf32, #tpu.memory_space<vmem>>, %arg6: memref<128x8xf32, #tpu.memory_space<vmem>>, %arg7: memref<1x8xf32, #tpu.memory_space<vmem>>, %arg8: memref<2x2xf32, #tpu.memory_space<vmem>>) attributes {dimension_semantics = [#tpu.dimension_semantics<parallel>], iteration_bounds = array<i64: 1>, scalar_prefetch = 0 : i64, scratch_operands = 0 : i64, tpu.core_type = #tpu.core_type<tc>, window_params = [{transform_indices = @transform_0, window_bounds = array<i64: 2, 64>}, {pipeline_mode = #tpu.pipeline_mode<synchronous>, transform_indices = @transform_1, window_bounds = array<i64: 64, 128>}, {pipeline_mode = #tpu.pipeline_mode<synchronous>, transform_indices = @transform_2, window_bounds = array<i64: 1, 128>}, {pipeline_mode = #tpu.pipeline_mode<synchronous>, transform_indices = @transform_3, window_bounds = array<i64: 128, 128>}, {pipeline_mode = #tpu.pipeline_mode<synchronous>, transform_indices = @transform_4, window_bounds = array<i64: 1, 128>}, {pipeline_mode = #tpu.pipeline_mode<synchronous>, transform_indices = @transform_5, window_bounds = array<i64: 128, 8>}, {pipeline_mode = #tpu.pipeline_mode<synchronous>, transform_indices = @transform_6, window_bounds = array<i64: 1, 8>}, {transform_indices = @transform_7, window_bounds = array<i64: 2, 2>}]} {
    %c0 = arith.constant 0 : index
    %c0_0 = arith.constant 0 : index
    %0 = vector.load %arg1[%c0, %c0_0] : memref<2x64xf32, #tpu.memory_space<vmem>>, vector<2x64xf32>
    %c0_1 = arith.constant 0 : index
    %c0_2 = arith.constant 0 : index
    %1 = vector.load %arg2[%c0_1, %c0_2] : memref<64x128xf32, #tpu.memory_space<vmem>>, vector<64x128xf32>
    %cst = arith.constant dense<0.000000e+00> : vector<2x128xf32>
    %2 = tpu.matmul %0, %1, %cst {dimension_numbers = #tpu.dot_dimension_numbers<[1], [0], [0], [1], [0, 0, 1, 1], [], []>} : vector<2x64xf32>, vector<64x128xf32>, vector<2x128xf32> -> vector<2x128xf32>
    %c0_3 = arith.constant 0 : index
    %c0_4 = arith.constant 0 : index
    %3 = vector.load %arg3[%c0_3, %c0_4] : memref<1x128xf32, #tpu.memory_space<vmem>>, vector<1x128xf32>
    %4 = vector.broadcast %3 : vector<1x128xf32> to vector<2x128xf32>
    %5 = arith.addf %2, %4 : vector<2x128xf32>
    %cst_5 = arith.constant 0.000000e+00 : f32
    %6 = vector.broadcast %cst_5 : f32 to vector<2x128xf32>
    %7 = arith.maximumf %5, %6 : vector<2x128xf32>
    %8 = vector.broadcast %cst_5 : f32 to vector<2x128xf32>
    %9 = arith.subf %5, %8 : vector<2x128xf32>
    %10 = arith.cmpf one, %9, %9 : vector<2x128xf32>
    %11 = vector.broadcast %cst_5 : f32 to vector<2x128xf32>
    %12 = arith.addf %5, %11 : vector<2x128xf32>
    %13 = math.absf %9 : vector<2x128xf32>
    %cst_6 = arith.constant 0.000000e+00 : f32
    %14 = vector.broadcast %cst_6 : f32 to vector<2x128xf32>
    %15 = arith.subf %14, %13 : vector<2x128xf32>
    %16 = math.exp %15 : vector<2x128xf32>
    %17 = math.log1p %16 : vector<2x128xf32>
    %18 = arith.addf %7, %17 : vector<2x128xf32>
    %19 = arith.select %10, %12, %18 : vector<2x128xi1>, vector<2x128xf32>
    %20 = math.tanh %19 : vector<2x128xf32>
    %21 = arith.mulf %5, %20 : vector<2x128xf32>
    %c0_7 = arith.constant 0 : index
    %c0_8 = arith.constant 0 : index
    %22 = vector.load %arg4[%c0_7, %c0_8] : memref<128x128xf32, #tpu.memory_space<vmem>>, vector<128x128xf32>
    %cst_9 = arith.constant dense<0.000000e+00> : vector<2x128xf32>
    %23 = tpu.matmul %21, %22, %cst_9 {dimension_numbers = #tpu.dot_dimension_numbers<[1], [0], [0], [1], [0, 0, 1, 1], [], []>} : vector<2x128xf32>, vector<128x128xf32>, vector<2x128xf32> -> vector<2x128xf32>
    %c0_10 = arith.constant 0 : index
    %c0_11 = arith.constant 0 : index
    %24 = vector.load %arg5[%c0_10, %c0_11] : memref<1x128xf32, #tpu.memory_space<vmem>>, vector<1x128xf32>
    %25 = vector.broadcast %24 : vector<1x128xf32> to vector<2x128xf32>
    %26 = arith.addf %23, %25 : vector<2x128xf32>
    %cst_12 = arith.constant 0.000000e+00 : f32
    %27 = vector.broadcast %cst_12 : f32 to vector<2x128xf32>
    %28 = arith.maximumf %26, %27 : vector<2x128xf32>
    %29 = vector.broadcast %cst_12 : f32 to vector<2x128xf32>
    %30 = arith.subf %26, %29 : vector<2x128xf32>
    %31 = arith.cmpf one, %30, %30 : vector<2x128xf32>
    %32 = vector.broadcast %cst_12 : f32 to vector<2x128xf32>
    %33 = arith.addf %26, %32 : vector<2x128xf32>
    %34 = math.absf %30 : vector<2x128xf32>
    %cst_13 = arith.constant 0.000000e+00 : f32
    %35 = vector.broadcast %cst_13 : f32 to vector<2x128xf32>
    %36 = arith.subf %35, %34 : vector<2x128xf32>
    %37 = math.exp %36 : vector<2x128xf32>
    %38 = math.log1p %37 : vector<2x128xf32>
    %39 = arith.addf %28, %38 : vector<2x128xf32>
    %40 = arith.select %31, %33, %39 : vector<2x128xi1>, vector<2x128xf32>
    %41 = math.tanh %40 : vector<2x128xf32>
    %42 = arith.mulf %26, %41 : vector<2x128xf32>
    %c0_14 = arith.constant 0 : index
    %c0_15 = arith.constant 0 : index
    %43 = vector.load %arg6[%c0_14, %c0_15] : memref<128x8xf32, #tpu.memory_space<vmem>>, vector<128x8xf32>
    %cst_16 = arith.constant dense<0.000000e+00> : vector<2x8xf32>
    %44 = tpu.matmul %42, %43, %cst_16 {dimension_numbers = #tpu.dot_dimension_numbers<[1], [0], [0], [1], [0, 0, 1, 1], [], []>} : vector<2x128xf32>, vector<128x8xf32>, vector<2x8xf32> -> vector<2x8xf32>
    %c0_17 = arith.constant 0 : index
    %c0_18 = arith.constant 0 : index
    %45 = vector.load %arg7[%c0_17, %c0_18] : memref<1x8xf32, #tpu.memory_space<vmem>>, vector<1x8xf32>
    %46 = vector.broadcast %45 : vector<1x8xf32> to vector<2x8xf32>
    %47 = arith.addf %44, %46 : vector<2x8xf32>
    %48 = tpu.transpose %47, [1, 0] : vector<2x8xf32> -> vector<8x2xf32>
    %49 = vector.extract_strided_slice %48 {offsets = [0, 0], sizes = [2, 2], strides = [1, 1]} : vector<8x2xf32> to vector<2x2xf32>
    %c0_19 = arith.constant 0 : index
    %c0_20 = arith.constant 0 : index
    %50 = vector.load %arg8[%c0_19, %c0_20] : memref<2x2xf32, #tpu.memory_space<vmem>>, vector<2x2xf32>
    tpu.vector_store %arg8[%c0_19, %c0_20], %49 {strides = array<i32>} : memref<2x2xf32, #tpu.memory_space<vmem>>, vector<2x2xf32>,
    return
  }
  func.func @transform_0(%arg0: i32) -> (i32, i32) {
    %c0_i32 = arith.constant 0 : i32
    %c0_i32_0 = arith.constant 0 : i32
    return %arg0, %c0_i32 : i32, i32
  }
  func.func @transform_1(%arg0: i32) -> (i32, i32) {
    %c0_i32 = arith.constant 0 : i32
    %c0_i32_0 = arith.constant 0 : i32
    %c0_i32_1 = arith.constant 0 : i32
    return %c0_i32, %c0_i32_0 : i32, i32
  }
  func.func @transform_2(%arg0: i32) -> (i32, i32) {
    %c0_i32 = arith.constant 0 : i32
    %c0_i32_0 = arith.constant 0 : i32
    %c0_i32_1 = arith.constant 0 : i32
    return %c0_i32, %c0_i32_0 : i32, i32
  }
  func.func @transform_3(%arg0: i32) -> (i32, i32) {
    %c0_i32 = arith.constant 0 : i32
    %c0_i32_0 = arith.constant 0 : i32
    %c0_i32_1 = arith.constant 0 : i32
    return %c0_i32, %c0_i32_0 : i32, i32
  }
  func.func @transform_4(%arg0: i32) -> (i32, i32) {
    %c0_i32 = arith.constant 0 : i32
    %c0_i32_0 = arith.constant 0 : i32
    %c0_i32_1 = arith.constant 0 : i32
    return %c0_i32, %c0_i32_0 : i32, i32
  }
  func.func @transform_5(%arg0: i32) -> (i32, i32) {
    %c0_i32 = arith.constant 0 : i32
    %c0_i32_0 = arith.constant 0 : i32
    %c0_i32_1 = arith.constant 0 : i32
    return %c0_i32, %c0_i32_0 : i32, i32
  }
  func.func @transform_6(%arg0: i32) -> (i32, i32) {
    %c0_i32 = arith.constant 0 : i32
    %c0_i32_0 = arith.constant 0 : i32
    %c0_i32_1 = arith.constant 0 : i32
    return %c0_i32, %c0_i32_0 : i32, i32
  }
  func.func @transform_7(%arg0: i32) -> (i32, i32) {
    %c0_i32 = arith.constant 0 : i32
    %c0_i32_0 = arith.constant 0 : i32
    return %c0_i32, %arg0 : i32, i32
  }
}

</mosaic_0001>

<llo_original>
// kernel: tpu_custom_call.1
$region0: #{tpu_custom_call.1}
  #allocation0 [shape = 'u32[]', space=smem, size = 0x4, offset = 0x4, fixed_abs, tag = 'smem constant byte address 0x4 - core index']
  #allocation1 [shape = 'u32[144,128]{1,0:T(1,128)}', space=vmem, size = 0x12000, scoped, tag = 'internal scratch']
  %s0 = inlined_call_operand.vmem [shape: f32[2,64], index: 0, kind: input, shape index: {}]
  %s1 = inlined_call_operand.hbm [shape: f32[64,128], index: 1, kind: input, shape index: {}]
  %s2 = inlined_call_operand.vmem [shape: f32[1,128], index: 2, kind: input, shape index: {}]
  %s3 = inlined_call_operand.vmem [shape: f32[128,128], index: 3, kind: input, shape index: {}]
  %s4 = inlined_call_operand.vmem [shape: f32[1,128], index: 4, kind: input, shape index: {}]
  %s5 = inlined_call_operand.vmem [shape: f32[128,8], index: 5, kind: input, shape index: {}]
  %s6 = inlined_call_operand.vmem [shape: f32[1,8], index: 6, kind: input, shape index: {}]
  %s7 = inlined_call_operand.hbm [shape: f32[2,2], index: 7, kind: output, shape index: {}]
  %s8 = sld [smem:[#allocation0]]
  $region42: #{tpu_custom_call.1} parent=0
    _
  %s10 = ssub.s32 1, %s8
  %s11 = scalar_select 0, %s10, %s8
  $region1: #{tpu_custom_call.1} parent=0
    #allocation2 [shape = 'u8[32768]{0}', space=vmem, size = 0x8000, scoped, tag = 'input window, operand 1, single buffered']
    #allocation3 [shape = 's32[1]{0}', space=sflag, size = 0x4, scoped, tag = 'scoped memory for tpu_custom_call.1']
    #allocation4 [shape = 's32[1]{0}', space=sflag, size = 0x4, scoped, tag = 'scoped memory for tpu_custom_call.1']
    #allocation5 [shape = 'u8[1024]{0}', space=vmem, size = 0x400, scoped, tag = 'output window, operand 0, single buffered']
    %12 = vsyncpa [#allocation3], 0
    %13 = vsyncpa [#allocation4], 0
    // Predicated region
    $region2: #{tpu_custom_call.1} parent=1 // pred_check
      _
    $region3: #{tpu_custom_call.1} parent=1 // pred_check_branch
      %15 = sbr.rel (0) target = $region5
    $region4: #{tpu_custom_call.1} parent=1 // pred_region
      _
    $region5: #{tpu_custom_call.1} parent=1 // pred_fallthru
      _
    // Predicated region
    $region6: #{tpu_custom_call.1} parent=1 // pred_check
      _
    $region7: #{tpu_custom_call.1} parent=1 // pred_check_branch
      %17 = sbr.rel (0) target = $region9
    $region8: #{tpu_custom_call.1} parent=1 // pred_region
      %s19 = ssub.s32 1024, 1024
      %20 = vsyncadd [#allocation3], %s19
      %s21 = sshll.u32 [#allocation2], 4
      %s22 = int_to_ptr.vmem [resolvable:$true] %s21
      %27 = dma.hbm_to_vmem [thread:$0]  %s1, 1024, %s22, [#allocation3], 128, 128, 8
    $region9: #{tpu_custom_call.1} parent=1 // pred_fallthru
      _
    // Predicated region
    $region10: #{tpu_custom_call.1} parent=1 // pred_check
      _
    $region11: #{tpu_custom_call.1} parent=1 // pred_check_branch
      %29 = sbr.rel (0) target = $region13
    $region12: #{tpu_custom_call.1} parent=1 // pred_region
      _
    $region13: #{tpu_custom_call.1} parent=1 // pred_fallthru
      _
    // Predicated region
    $region14: #{tpu_custom_call.1} parent=1 // pred_check
      _
    $region15: #{tpu_custom_call.1} parent=1 // pred_check_branch
      %31 = sbr.rel (0) target = $region17
    $region16: #{tpu_custom_call.1} parent=1 // pred_region
      _
    $region17: #{tpu_custom_call.1} parent=1 // pred_fallthru
      _
    // Predicated region
    $region18: #{tpu_custom_call.1} parent=1 // pred_check
      _
    $region19: #{tpu_custom_call.1} parent=1 // pred_check_branch
      %33 = sbr.rel (0) target = $region21
    $region20: #{tpu_custom_call.1} parent=1 // pred_region
      _
    $region21: #{tpu_custom_call.1} parent=1 // pred_fallthru
      _
    // Predicated region
    $region22: #{tpu_custom_call.1} parent=1 // pred_check
      _
    $region23: #{tpu_custom_call.1} parent=1 // pred_check_branch
      %35 = sbr.rel (0) target = $region25
    $region24: #{tpu_custom_call.1} parent=1 // pred_region
      _
    $region25: #{tpu_custom_call.1} parent=1 // pred_fallthru
      _
    // Predicated region
    $region26: #{tpu_custom_call.1} parent=1 // pred_check
      _
    $region27: #{tpu_custom_call.1} parent=1 // pred_check_branch
      %37 = sbr.rel (0) target = $region29
    $region28: #{tpu_custom_call.1} parent=1 // pred_region
      _
    $region29: #{tpu_custom_call.1} parent=1 // pred_fallthru
      _
    // Predicated region
    $region30: #{tpu_custom_call.1} parent=1 // pred_check
      _
    $region31: #{tpu_custom_call.1} parent=1 // pred_check_branch
      %39 = sbr.rel (0) target = $region33
    $region32: #{tpu_custom_call.1} parent=1 // pred_region
      %40 = dma.done [#allocation3], 1024
    $region33: #{tpu_custom_call.1} parent=1 // pred_fallthru
      _
    %v41 = vld [vmem:[%s0] sm:$0x3]
    %v42 = vld [vmem:[#allocation2] sm:$0xff]
    %v43 = vld [vmem:[#allocation2 + $0x8] sm:$0xff]
    %v44 = vld [vmem:[#allocation2 + $0x10] sm:$0xff]
    %v45 = vld [vmem:[#allocation2 + $0x18] sm:$0xff]
    %v46 = vld [vmem:[#allocation2 + $0x20] sm:$0xff]
    %v47 = vld [vmem:[#allocation2 + $0x28] sm:$0xff]
    %v48 = vld [vmem:[#allocation2 + $0x30] sm:$0xff]
    %v49 = vld [vmem:[#allocation2 + $0x38] sm:$0xff]
    %v50 = vld [vmem:[%s2] sm:$0x1]
    %v52 = vlaneseq
    %v53 = vshrl.u32 %v52, 7
    %v54 = vsub.s32 0, %v53
    %v55 = vrot.slane %v50, %v54
    %vm57 = vcmask 523264
    %v59 = vsel %vm57, %v41, 0
    %61 = vmatprep.subr.mxu0 0.0
    %62 = vmatpush1.msra.mxu0 0.0
    %63 = vmatprep.subr.mxu0 0.0
    %64 = vmatpush1.msra.mxu0 0.0
    %65 = vmatprep.subr.mxu0 0.0
    %66 = vmatpush1.msra.mxu0 0.0
    %67 = vmatprep.subr.mxu0 0.0
    %68 = vmatpush1.msra.mxu0 0.0
    %69 = vmatprep.subr.mxu0 0.0
    %70 = vmatpush1.msra.mxu0 0.0
    %71 = vmatprep.subr.mxu0 0.0
    %72 = vmatpush1.msra.mxu0 0.0
    %73 = vmatprep.subr.mxu0 0.0
    %74 = vmatpush1.msra.mxu0 0.0
    %75 = vmatprep.subr.mxu0 0.0
    %76 = vmatpush1.msra.mxu0 0.0
    %77 = vmatprep.subr.mxu0 0.0
    %78 = vmatpush1.msra.mxu0 %v49
    %79 = vmatprep.subr.mxu0 0.0
    %80 = vmatpush1.msra.mxu0 %v48
    %81 = vmatprep.subr.mxu0 0.0
    %82 = vmatpush1.msra.mxu0 %v47
    %83 = vmatprep.subr.mxu0 0.0
    %84 = vmatpush1.msra.mxu0 %v46
    %85 = vmatprep.subr.mxu0 0.0
    %86 = vmatpush1.msra.mxu0 %v45
    %87 = vmatprep.subr.mxu0 0.0
    %88 = vmatpush1.msra.mxu0 %v44
    %89 = vmatprep.subr.mxu0 0.0
    %90 = vmatpush1.msra.mxu0 %v43
    %91 = vmatprep.subr.mxu0 0.0
    %92 = vmatpush1.msra.mxu0 %v42
    %93 = vmatprep.subr.mxu0 0.0
    %94 = vmatpush2.msra.mxu0 0.0
    %95 = vmatprep.subr.mxu0 0.0
    %96 = vmatpush2.msra.mxu0 0.0
    %97 = vmatprep.subr.mxu0 0.0
    %98 = vmatpush2.msra.mxu0 0.0
    %99 = vmatprep.subr.mxu0 0.0
    %100 = vmatpush2.msra.mxu0 0.0
    %101 = vmatprep.subr.mxu0 0.0
    %102 = vmatpush2.msra.mxu0 0.0
    %103 = vmatprep.subr.mxu0 0.0
    %104 = vmatpush2.msra.mxu0 0.0
    %105 = vmatprep.subr.mxu0 0.0
    %106 = vmatpush2.msra.mxu0 0.0
    %107 = vmatprep.subr.mxu0 0.0
    %108 = vmatpush2.msra.mxu0 0.0
    %109 = vmatprep.subr.mxu0 0.0
    %110 = vmatpush2.msra.mxu0 0.0
    %111 = vmatprep.subr.mxu0 0.0
    %112 = vmatpush2.msra.mxu0 0.0
    %113 = vmatprep.subr.mxu0 0.0
    %114 = vmatpush2.msra.mxu0 0.0
    %115 = vmatprep.subr.mxu0 0.0
    %116 = vmatpush2.msra.mxu0 0.0
    %117 = vmatprep.subr.mxu0 0.0
    %118 = vmatpush2.msra.mxu0 0.0
    %119 = vmatprep.subr.mxu0 0.0
    %120 = vmatpush2.msra.mxu0 0.0
    %121 = vmatprep.subr.mxu0 0.0
    %122 = vmatpush2.msra.mxu0 0.0
    %123 = vmatprep.subr.mxu0 0.0
    %124 = vmatpush2.msra.mxu0 0.0
    %125 = vmatprep.mubr.f32.mxu0 0.0
    %126 = vmatmul.mubr.f32.gmra.mxu0 %v59
    %v127 = vpop.f32.mrf.mxu0
    %v128 = vadd.f32 %v55, %v127
    %v129 = vpop.f32.mrf.mxu0
    %130 = vdwg.mxu0
    %v131 = vmax.f32 %v128, 0.0
    %vm132 = vcmp.ne.f32.partialorder %v128, %v128
    %v133 = vadd.f32 %v128, 0.0
    %v134 = vand.u32 2147483647, %v128
    %v135 = vsub.f32 0.0, %v134
    %v136 = vmul.f32 %v135, 1.442695
    %v137 = vpow.pop %v136
    %v138 = vadd.f32 %v137, 1.0
    %v139 = vlog2.pop %v138
    %v140 = vmul.f32 %v139, 0.6931472
    %v141 = vmul.f32 -0.5, %v137
    %v142 = vadd.f32 %v141, 1.0
    %v143 = vmul.f32 %v142, %v137
    %v144 = vand.u32 2147483647, %v137
    %vm145 = vcmp.lt.f32.partialorder %v144, 0.0004427343
    %v146 = vsel %vm145, %v143, %v140
    %v147 = vadd.f32 %v131, %v146
    %v148 = vsel %vm132, %v133, %v147
    %v149 = vtanh.pop %v148
    %v150 = vmul.f32 %v128, %v149
    %v151 = vld [vmem:[%s3] sm:$0xff]
    %v152 = vld [vmem:[%s3 + $0x8] sm:$0xff]
    %v153 = vld [vmem:[%s3 + $0x10] sm:$0xff]
    %v154 = vld [vmem:[%s3 + $0x18] sm:$0xff]
    %v155 = vld [vmem:[%s3 + $0x20] sm:$0xff]
    %v156 = vld [vmem:[%s3 + $0x28] sm:$0xff]
    %v157 = vld [vmem:[%s3 + $0x30] sm:$0xff]
    %v158 = vld [vmem:[%s3 + $0x38] sm:$0xff]
    %v159 = vld [vmem:[%s3 + $0x40] sm:$0xff]
    %v160 = vld [vmem:[%s3 + $0x48] sm:$0xff]
    %v161 = vld [vmem:[%s3 + $0x50] sm:$0xff]
    %v162 = vld [vmem:[%s3 + $0x58] sm:$0xff]
    %v163 = vld [vmem:[%s3 + $0x60] sm:$0xff]
    %v164 = vld [vmem:[%s3 + $0x68] sm:$0xff]
    %v165 = vld [vmem:[%s3 + $0x70] sm:$0xff]
    %v166 = vld [vmem:[%s3 + $0x78] sm:$0xff]
    %v167 = vld [vmem:[%s4] sm:$0x1]
    %v169 = vlaneseq
    %v170 = vshrl.u32 %v169, 7
    %v171 = vsub.s32 0, %v170
    %v172 = vrot.slane %v167, %v171
    %174 = vmatprep.subr.mxu0 0.0
    %175 = vmatpush1.msra.mxu0 %v166
    %176 = vmatprep.subr.mxu0 0.0
    %177 = vmatpush1.msra.mxu0 %v165
    %178 = vmatprep.subr.mxu0 0.0
    %179 = vmatpush1.msra.mxu0 %v164
    %180 = vmatprep.subr.mxu0 0.0
    %181 = vmatpush1.msra.mxu0 %v163
    %182 = vmatprep.subr.mxu0 0.0
    %183 = vmatpush1.msra.mxu0 %v162
    %184 = vmatprep.subr.mxu0 0.0
    %185 = vmatpush1.msra.mxu0 %v161
    %186 = vmatprep.subr.mxu0 0.0
    %187 = vmatpush1.msra.mxu0 %v160
    %188 = vmatprep.subr.mxu0 0.0
    %189 = vmatpush1.msra.mxu0 %v159
    %190 = vmatprep.subr.mxu0 0.0
    %191 = vmatpush1.msra.mxu0 %v158
    %192 = vmatprep.subr.mxu0 0.0
    %193 = vmatpush1.msra.mxu0 %v157
    %194 = vmatprep.subr.mxu0 0.0
    %195 = vmatpush1.msra.mxu0 %v156
    %196 = vmatprep.subr.mxu0 0.0
    %197 = vmatpush1.msra.mxu0 %v155
    %198 = vmatprep.subr.mxu0 0.0
    %199 = vmatpush1.msra.mxu0 %v154
    %200 = vmatprep.subr.mxu0 0.0
    %201 = vmatpush1.msra.mxu0 %v153
    %202 = vmatprep.subr.mxu0 0.0
    %203 = vmatpush1.msra.mxu0 %v152
    %204 = vmatprep.subr.mxu0 0.0
    %205 = vmatpush1.msra.mxu0 %v151
    %206 = vmatprep.subr.mxu0 0.0
    %207 = vmatpush2.msra.mxu0 0.0
    %208 = vmatprep.subr.mxu0 0.0
    %209 = vmatpush2.msra.mxu0 0.0
    %210 = vmatprep.subr.mxu0 0.0
    %211 = vmatpush2.msra.mxu0 0.0
    %212 = vmatprep.subr.mxu0 0.0
    %213 = vmatpush2.msra.mxu0 0.0
    %214 = vmatprep.subr.mxu0 0.0
    %215 = vmatpush2.msra.mxu0 0.0
    %216 = vmatprep.subr.mxu0 0.0
    %217 = vmatpush2.msra.mxu0 0.0
    %218 = vmatprep.subr.mxu0 0.0
    %219 = vmatpush2.msra.mxu0 0.0
    %220 = vmatprep.subr.mxu0 0.0
    %221 = vmatpush2.msra.mxu0 0.0
    %222 = vmatprep.subr.mxu0 0.0
    %223 = vmatpush2.msra.mxu0 0.0
    %224 = vmatprep.subr.mxu0 0.0
    %225 = vmatpush2.msra.mxu0 0.0
    %226 = vmatprep.subr.mxu0 0.0
    %227 = vmatpush2.msra.mxu0 0.0
    %228 = vmatprep.subr.mxu0 0.0
    %229 = vmatpush2.msra.mxu0 0.0
    %230 = vmatprep.subr.mxu0 0.0
    %231 = vmatpush2.msra.mxu0 0.0
    %232 = vmatprep.subr.mxu0 0.0
    %233 = vmatpush2.msra.mxu0 0.0
    %234 = vmatprep.subr.mxu0 0.0
    %235 = vmatpush2.msra.mxu0 0.0
    %236 = vmatprep.subr.mxu0 0.0
    %237 = vmatpush2.msra.mxu0 0.0
    %238 = vmatprep.mubr.f32.mxu0 0.0
    %239 = vmatmul.mubr.f32.gmra.mxu0 %v150
    %v240 = vpop.f32.mrf.mxu0
    %v241 = vadd.f32 %v172, %v240
    %v242 = vpop.f32.mrf.mxu0
    %243 = vdwg.mxu0
    %v244 = vmax.f32 %v241, 0.0
    %vm245 = vcmp.ne.f32.partialorder %v241, %v241
    %v246 = vadd.f32 %v241, 0.0
    %v247 = vand.u32 2147483647, %v241
    %v248 = vsub.f32 0.0, %v247
    %v249 = vmul.f32 %v248, 1.442695
    %v250 = vpow.pop %v249
    %v251 = vadd.f32 %v250, 1.0
    %v252 = vlog2.pop %v251
    %v253 = vmul.f32 %v252, 0.6931472
    %v254 = vmul.f32 -0.5, %v250
    %v255 = vadd.f32 %v254, 1.0
    %v256 = vmul.f32 %v255, %v250
    %v257 = vand.u32 2147483647, %v250
    %vm258 = vcmp.lt.f32.partialorder %v257, 0.0004427343
    %v259 = vsel %vm258, %v256, %v253
    %v260 = vadd.f32 %v244, %v259
    %v261 = vsel %vm245, %v246, %v260
    %v262 = vtanh.pop %v261
    %v263 = vmul.f32 %v241, %v262
    %v264 = vld [vmem:[%s5] sm:$0xff]
    %v265 = vld [vmem:[%s5 + $0x8] sm:$0xff]
    %v266 = vld [vmem:[%s5 + $0x10] sm:$0xff]
    %v267 = vld [vmem:[%s5 + $0x18] sm:$0xff]
    %v268 = vld [vmem:[%s5 + $0x20] sm:$0xff]
    %v269 = vld [vmem:[%s5 + $0x28] sm:$0xff]
    %v270 = vld [vmem:[%s5 + $0x30] sm:$0xff]
    %v271 = vld [vmem:[%s5 + $0x38] sm:$0xff]
    %v272 = vld [vmem:[%s5 + $0x40] sm:$0xff]
    %v273 = vld [vmem:[%s5 + $0x48] sm:$0xff]
    %v274 = vld [vmem:[%s5 + $0x50] sm:$0xff]
    %v275 = vld [vmem:[%s5 + $0x58] sm:$0xff]
    %v276 = vld [vmem:[%s5 + $0x60] sm:$0xff]
    %v277 = vld [vmem:[%s5 + $0x68] sm:$0xff]
    %v278 = vld [vmem:[%s5 + $0x70] sm:$0xff]
    %v279 = vld [vmem:[%s5 + $0x78] sm:$0xff]
    %v280 = vld [vmem:[%s6] sm:$0x1]
    %v282 = vlaneseq
    %v283 = vshrl.u32 %v282, 7
    %v284 = vsub.s32 0, %v283
    %v285 = vrot.slane %v280, %v284
    %287 = vmatprep.subr.mxu0 0.0
    %288 = vmatpush1.msra.mxu0 %v279
    %289 = vmatprep.subr.mxu0 0.0
    %290 = vmatpush1.msra.mxu0 %v278
    %291 = vmatprep.subr.mxu0 0.0
    %292 = vmatpush1.msra.mxu0 %v277
    %293 = vmatprep.subr.mxu0 0.0
    %294 = vmatpush1.msra.mxu0 %v276
    %295 = vmatprep.subr.mxu0 0.0
    %296 = vmatpush1.msra.mxu0 %v275
    %297 = vmatprep.subr.mxu0 0.0
    %298 = vmatpush1.msra.mxu0 %v274
    %299 = vmatprep.subr.mxu0 0.0
    %300 = vmatpush1.msra.mxu0 %v273
    %301 = vmatprep.subr.mxu0 0.0
    %302 = vmatpush1.msra.mxu0 %v272
    %303 = vmatprep.subr.mxu0 0.0
    %304 = vmatpush1.msra.mxu0 %v271
    %305 = vmatprep.subr.mxu0 0.0
    %306 = vmatpush1.msra.mxu0 %v270
    %307 = vmatprep.subr.mxu0 0.0
    %308 = vmatpush1.msra.mxu0 %v269
    %309 = vmatprep.subr.mxu0 0.0
    %310 = vmatpush1.msra.mxu0 %v268
    %311 = vmatprep.subr.mxu0 0.0
    %312 = vmatpush1.msra.mxu0 %v267
    %313 = vmatprep.subr.mxu0 0.0
    %314 = vmatpush1.msra.mxu0 %v266
    %315 = vmatprep.subr.mxu0 0.0
    %316 = vmatpush1.msra.mxu0 %v265
    %317 = vmatprep.subr.mxu0 0.0
    %318 = vmatpush1.msra.mxu0 %v264
    %319 = vmatprep.subr.mxu0 0.0
    %320 = vmatpush2.msra.mxu0 0.0
    %321 = vmatprep.subr.mxu0 0.0
    %322 = vmatpush2.msra.mxu0 0.0
    %323 = vmatprep.subr.mxu0 0.0
    %324 = vmatpush2.msra.mxu0 0.0
    %325 = vmatprep.subr.mxu0 0.0
    %326 = vmatpush2.msra.mxu0 0.0
    %327 = vmatprep.subr.mxu0 0.0
    %328 = vmatpush2.msra.mxu0 0.0
    %329 = vmatprep.subr.mxu0 0.0
    %330 = vmatpush2.msra.mxu0 0.0
    %331 = vmatprep.subr.mxu0 0.0
    %332 = vmatpush2.msra.mxu0 0.0
    %333 = vmatprep.subr.mxu0 0.0
    %334 = vmatpush2.msra.mxu0 0.0
    %335 = vmatprep.subr.mxu0 0.0
    %336 = vmatpush2.msra.mxu0 0.0
    %337 = vmatprep.subr.mxu0 0.0
    %338 = vmatpush2.msra.mxu0 0.0
    %339 = vmatprep.subr.mxu0 0.0
    %340 = vmatpush2.msra.mxu0 0.0
    %341 = vmatprep.subr.mxu0 0.0
    %342 = vmatpush2.msra.mxu0 0.0
    %343 = vmatprep.subr.mxu0 0.0
    %344 = vmatpush2.msra.mxu0 0.0
    %345 = vmatprep.subr.mxu0 0.0
    %346 = vmatpush2.msra.mxu0 0.0
    %347 = vmatprep.subr.mxu0 0.0
    %348 = vmatpush2.msra.mxu0 0.0
    %349 = vmatprep.subr.mxu0 0.0
    %350 = vmatpush2.msra.mxu0 0.0
    %351 = vmatprep.mubr.f32.mxu0 0.0
    %352 = vmatmul.mubr.f32.gmra.mxu0 %v263
    %v353 = vpop.f32.mrf.mxu0
    %v354 = vadd.f32 %v285, %v353
    %v355 = vpop.f32.mrf.mxu0
    %356 = vdwg.mxu0
    %357 = vxpose.xlu0.b32.start [1/16] %v354, 128
    %358 = vxpose.xlu0.b32.cont [2/16] 0.0, 128
    %359 = vxpose.xlu0.b32.cont [3/16] 0.0, 128
    %360 = vxpose.xlu0.b32.cont [4/16] 0.0, 128
    %361 = vxpose.xlu0.b32.cont [5/16] 0.0, 128
    %362 = vxpose.xlu0.b32.cont [6/16] 0.0, 128
    %363 = vxpose.xlu0.b32.cont [7/16] 0.0, 128
    %364 = vxpose.xlu0.b32.cont [8/16] 0.0, 128
    %365 = vxpose.xlu0.b32.cont [9/16] 0.0, 128
    %366 = vxpose.xlu0.b32.cont [10/16] 0.0, 128
    %367 = vxpose.xlu0.b32.cont [11/16] 0.0, 128
    %368 = vxpose.xlu0.b32.cont [12/16] 0.0, 128
    %369 = vxpose.xlu0.b32.cont [13/16] 0.0, 128
    %370 = vxpose.xlu0.b32.cont [14/16] 0.0, 128
    %371 = vxpose.xlu0.b32.cont [15/16] 0.0, 128
    %372 = vxpose.xlu0.b32.end [16/16] 0.0, 128
    %v373 = vpop.trf.xlu0
    %v374 = vpop.trf.xlu0
    %v375 = vpop.trf.xlu0
    %v376 = vpop.trf.xlu0
    %v377 = vpop.trf.xlu0
    %v378 = vpop.trf.xlu0
    %v379 = vpop.trf.xlu0
    %v380 = vpop.trf.xlu0
    %v381 = vpop.trf.xlu0
    %v382 = vpop.trf.xlu0
    %v383 = vpop.trf.xlu0
    %v384 = vpop.trf.xlu0
    %v385 = vpop.trf.xlu0
    %v386 = vpop.trf.xlu0
    %v387 = vpop.trf.xlu0
    %v388 = vpop.trf.xlu0
    %vm389 = vcmask 9216
    %390 = vst.msk [vmem:[#allocation5] sm:$0x3] %vm389, %v373
    // Predicated region
    $region34: #{tpu_custom_call.1} parent=1 // pred_check
      _
    $region35: #{tpu_custom_call.1} parent=1 // pred_check_branch
      %392 = sbr.rel (0) target = $region37
    $region36: #{tpu_custom_call.1} parent=1 // pred_region
      %s394 = ssub.s32 32, 32
      %395 = vsyncadd [#allocation4], %s394
      %s397 = sshll.u32 [#allocation5], 4
      %s398 = int_to_ptr.vmem [resolvable:$true] %s397
      %400 = dma.vmem_to_hbm [thread:$0]  %s398, 32, %s7, [#allocation4]
    $region37: #{tpu_custom_call.1} parent=1 // pred_fallthru
      _
    // Predicated region
    $region38: #{tpu_custom_call.1} parent=1 // pred_check
      _
    $region39: #{tpu_custom_call.1} parent=1 // pred_check_branch
      %402 = sbr.rel (0) target = $region41
    $region40: #{tpu_custom_call.1} parent=1 // pred_region
      %403 = dma.done [#allocation4], 32
    $region41: #{tpu_custom_call.1} parent=1 // pred_fallthru
      _
    %404 = vsyncpa [#allocation3], 1
    %405 = vsyncpa [#allocation4], 1

</llo_original>
